<compile_context>
chip_gen: v6e
topology: v6e:2x2x1
jax: 0.10.0
libtpu: 0.0.40
codegen_flags: <defaults>
</compile_context>

<pallas_src>
import functools

import jax
import jax.numpy as jnp
import numpy as np
from jax.experimental import pallas as pl
from jax.experimental.pallas import tpu as pltpu


def _round_up(x, m):
    return ((x + m - 1) // m) * m


def _som_kernel(z_ref, nodes_ref, ndsq_ref, somz_ref, qb_ref,
                *, alpha, time_decay, seq_len):
    tm, _ = z_ref.shape
    n_nodes = nodes_ref.shape[0]
    q_pad = qb_ref.shape[1]

    z = z_ref[...]                       # [TM, D] f32 (original, un-weighted)
    nodes = nodes_ref[...]               # [N, D]  f32, VMEM-resident across tiles
    nd_sq = ndsq_ref[...]                # [1, N]  f32, precomputed ||nodes||^2

    # ---- time-decay weights, computed in-kernel from the global row index ----
    row = jax.lax.broadcasted_iota(jnp.int32, (tm, 1), 0).astype(jnp.float32)
    g = row + jnp.float32(pl.program_id(0) * tm)           # global flat row id
    seq_f = float(seq_len)
    t = g - seq_f * jnp.floor(g / seq_f)                   # t = g mod T (exact: g << 2^24)
    log_decay = float(np.log(time_decay))
    tw = jnp.exp(((seq_f - 1.0) - t) * log_decay)          # [TM,1] = decay^(T-1-t)

    wz = z * tw                                            # weighted_z

    # ---- pairwise L2 distances via the MXU: ||a-b||^2 = ||a||^2 + ||b||^2 - 2ab ----
    wz_sq = jnp.sum(wz * wz, axis=-1, keepdims=True)       # [TM, 1]
    cross = jax.lax.dot_general(                           # [TM, N], contract D vs D
        wz, nodes, dimension_numbers=(((1,), (1,)), ((), ())),
        preferred_element_type=jnp.float32)
    d2 = jnp.maximum(wz_sq + nd_sq - 2.0 * cross, 0.0)
    dists = jnp.sqrt(d2)                                   # [TM, N]

    # ---- Student-t similarity + L1 normalization (F.normalize p=1, eps=1e-12) ----
    if alpha == 1.0:
        q_un = pl.reciprocal(1.0 + dists)                  # exponent == 1: no pow needed
    else:
        p = -(alpha + 1.0) / 2.0
        q_un = jnp.exp(p * jnp.log(1.0 + dists / alpha))   # explicit exp/log pow
    denom = jnp.maximum(jnp.sum(q_un, axis=-1, keepdims=True), 1e-12)
    q = q_un * pl.reciprocal(denom)

    # ---- BMU = argmin over nodes (first index on ties, matching torch.min) ----
    min_d = jnp.min(dists, axis=-1, keepdims=True)                 # [TM, 1]
    col = jax.lax.broadcasted_iota(jnp.int32, dists.shape, 1)      # [TM, N]
    bmu = jnp.min(jnp.where(dists == min_d, col, n_nodes),
                  axis=-1, keepdims=True)                          # [TM, 1] i32

    # ---- gather nodes[bmu] with a one-hot matmul (MXU-friendly gather) ----
    onehot = (col == bmu).astype(jnp.float32)                      # [TM, N]
    sel = jnp.dot(onehot, nodes, preferred_element_type=jnp.float32)

    somz_ref[...] = z + 0.1 * (sel - z)

    # ---- lane-dense aux output block: q in cols [0,N), bmu (as f32) in col N ----
    qb_ref[...] = jnp.zeros((tm, q_pad), jnp.float32)
    qb_ref[:, 0:n_nodes] = q
    qb_ref[:, n_nodes:n_nodes + 1] = bmu.astype(jnp.float32)


def som_layer_forward(z, nodes, *, alpha=1.0, time_decay=0.9, grid_size=(4, 4),
                      block_m=512):
    """z: [B, T, D] f32, nodes: [N, D] f32. Returns (som_z, aux)."""
    B, T, D = z.shape
    N = nodes.shape[0]
    M = B * T

    # Tile over M (multiple of 8 sublanes); pad M so the grid divides evenly.
    TM = min(block_m, _round_up(M, 8))
    M_pad = _round_up(M, TM)

    z_flat = z.reshape(M, D).astype(jnp.float32)
    if M_pad != M:
        z_flat = jnp.pad(z_flat, ((0, M_pad - M), (0, 0)))

    nodes_f = nodes.astype(jnp.float32)
    # ||nodes||^2 hoisted out of the kernel (computed once, stays VMEM-resident).
    nd_sq = jnp.sum(nodes_f * nodes_f, axis=-1)[None, :]           # [1, N]

    # Lane-dense aux slab width: q (N cols) + bmu (1 col), rounded up to 128 lanes.
    QPAD = max(128, _round_up(N + 1, 128))

    kernel = functools.partial(
        _som_kernel, alpha=float(alpha), time_decay=float(time_decay), seq_len=T)

    som_z_flat, qb = pl.pallas_call(
        kernel,
        grid=(M_pad // TM,),
        in_specs=[
            pl.BlockSpec((TM, D), lambda i: (i, 0)),       # z tile (pipelined)
            pl.BlockSpec((N, D), lambda i: (0, 0)),        # nodes: VMEM-resident
            pl.BlockSpec((1, N), lambda i: (0, 0)),        # ||nodes||^2: resident
        ],
        out_specs=[
            pl.BlockSpec((TM, D), lambda i: (i, 0)),       # som_z tile
            pl.BlockSpec((TM, QPAD), lambda i: (i, 0)),    # lane-dense q/bmu slab
        ],
        out_shape=[
            jax.ShapeDtypeStruct((M_pad, D), jnp.float32),
            jax.ShapeDtypeStruct((M_pad, QPAD), jnp.float32),
        ],
        compiler_params=pltpu.CompilerParams(
            dimension_semantics=("parallel",),             # megacore-shardable (v7x)
            vmem_limit_bytes=32 * 1024 * 1024,             # explicit; safe on v5e/v6e/v7x
        ),
    )(z_flat, nodes_f, nd_sq)

    som_z = som_z_flat[:M].reshape(B, T, D)
    q = qb[:M, :N]                                         # [B*T, N]
    bmu_indices = qb[:M, N].astype(jnp.int32).reshape(B, T)
    aux = {
        "q": q,                                            # [B*T, N]
        "bmu_indices": bmu_indices,                        # [B, T]
        "nodes": nodes.reshape(grid_size[0], grid_size[1], D),
        "grid_size": grid_size,
        "time_decay": time_decay,
    }
    return som_z, aux


def _reference(z, nodes, alpha, time_decay):
    # Pure-JAX reference mirroring the PyTorch forward.
    B, T, D = z.shape
    tw = (time_decay ** (T - 1 - jnp.arange(T, dtype=jnp.float32)))[None, :, None]
    wz = (z * tw).reshape(-1, D)
    diff = wz[:, None, :] - nodes[None, :, :]
    dists = jnp.sqrt(jnp.sum(diff * diff, axis=-1))
    q = 1.0 / (1.0 + dists / alpha) ** ((alpha + 1.0) / 2.0)
    q = q / jnp.sum(q, axis=-1, keepdims=True)
    bmu = jnp.argmin(dists, axis=-1)
    som_z = z + 0.1 * (nodes[bmu].reshape(z.shape) - z)
    return som_z, q, bmu.reshape(B, T)


if __name__ == "__main__":
    # Small, deterministic configuration.
    grid_size = (4, 4)
    latent_dim = 32
    alpha = 1.0
    time_decay = 0.9
    B, T = 2, 8
    n_nodes = grid_size[0] * grid_size[1]

    key = jax.random.PRNGKey(0)
    k_z, k_nodes = jax.random.split(key)

    # Xavier-uniform init for nodes [n_nodes, latent_dim] (as nn.init.xavier_uniform_)
    bound = float(np.sqrt(6.0 / (n_nodes + latent_dim)))
    nodes = jax.random.uniform(
        k_nodes, (n_nodes, latent_dim), jnp.float32, minval=-bound, maxval=bound)

    z = jax.random.normal(k_z, (B, T, latent_dim), jnp.float32)

    som_z, aux = som_layer_forward(
        z, nodes, alpha=alpha, time_decay=time_decay, grid_size=grid_size)
    jax.block_until_ready(som_z)
    jax.block_until_ready(aux["q"])
    jax.block_until_ready(aux["bmu_indices"])

    # Correctness check against a pure-JAX reference.
    ref_som_z, ref_q, ref_bmu = _reference(z, nodes, alpha, time_decay)
    assert np.allclose(np.asarray(som_z), np.asarray(ref_som_z), atol=1e-5, rtol=1e-5)
    assert np.allclose(np.asarray(aux["q"]), np.asarray(ref_q), atol=1e-5, rtol=1e-5)
    assert np.array_equal(np.asarray(aux["bmu_indices"]), np.asarray(ref_bmu))

    print("KERNEL_OK")
</pallas_src>

<mosaic_0001>
module attributes {stable_mosaic.version = 11 : i64} {
  func.func @_som_kernel(%arg0: i32, %arg1: memref<16x32xf32, #tpu.memory_space<vmem>>, %arg2: memref<16x32xf32, #tpu.memory_space<vmem>>, %arg3: memref<1x16xf32, #tpu.memory_space<vmem>>, %arg4: memref<16x32xf32, #tpu.memory_space<vmem>>, %arg5: memref<16x128xf32, #tpu.memory_space<vmem>>) attributes {dimension_semantics = [#tpu.dimension_semantics<parallel>], iteration_bounds = array<i64: 1>, scalar_prefetch = 0 : i64, scratch_operands = 0 : i64, tpu.core_type = #tpu.core_type<tc>, window_params = [{transform_indices = @transform_0, window_bounds = array<i64: 16, 32>}, {pipeline_mode = #tpu.pipeline_mode<synchronous>, transform_indices = @transform_1, window_bounds = array<i64: 16, 32>}, {pipeline_mode = #tpu.pipeline_mode<synchronous>, transform_indices = @transform_2, window_bounds = array<i64: 1, 16>}, {transform_indices = @transform_3, window_bounds = array<i64: 16, 32>}, {transform_indices = @transform_4, window_bounds = array<i64: 16, 128>}]} {
    %c0 = arith.constant 0 : index
    %c0_0 = arith.constant 0 : index
    %0 = vector.load %arg1[%c0, %c0_0] : memref<16x32xf32, #tpu.memory_space<vmem>>, vector<16x32xf32>
    %c0_1 = arith.constant 0 : index
    %c0_2 = arith.constant 0 : index
    %1 = vector.load %arg2[%c0_1, %c0_2] : memref<16x32xf32, #tpu.memory_space<vmem>>, vector<16x32xf32>
    %c0_3 = arith.constant 0 : index
    %c0_4 = arith.constant 0 : index
    %2 = vector.load %arg3[%c0_3, %c0_4] : memref<1x16xf32, #tpu.memory_space<vmem>>, vector<1x16xf32>
    %3 = tpu.iota {dimensions = array<i32: 0>} : vector<16x1xi32>
    %4 = arith.sitofp %3 : vector<16x1xi32> to vector<16x1xf32>
    %c16_i32 = arith.constant 16 : i32
    %5 = arith.muli %arg0, %c16_i32 : i32
    %6 = arith.sitofp %5 : i32 to f32
    %7 = vector.broadcast %6 : f32 to vector<16x1xf32>
    %8 = arith.addf %4, %7 : vector<16x1xf32>
    %cst = arith.constant 8.000000e+00 : f32
    %9 = vector.broadcast %cst : f32 to vector<16x1xf32>
    %10 = arith.divf %8, %9 : vector<16x1xf32>
    %11 = math.floor %10 : vector<16x1xf32>
    %cst_5 = arith.constant 8.000000e+00 : f32
    %12 = vector.broadcast %cst_5 : f32 to vector<16x1xf32>
    %13 = arith.mulf %12, %11 : vector<16x1xf32>
    %14 = arith.subf %8, %13 : vector<16x1xf32>
    %cst_6 = arith.constant 7.000000e+00 : f32
    %15 = vector.broadcast %cst_6 : f32 to vector<16x1xf32>
    %16 = arith.subf %15, %14 : vector<16x1xf32>
    %cst_7 = arith.constant -0.105360515 : f32
    %17 = vector.broadcast %cst_7 : f32 to vector<16x1xf32>
    %18 = arith.mulf %16, %17 : vector<16x1xf32>
    %19 = math.exp %18 : vector<16x1xf32>
    %20 = vector.broadcast %19 : vector<16x1xf32> to vector<16x32xf32>
    %21 = arith.mulf %0, %20 : vector<16x32xf32>
    %22 = arith.mulf %21, %21 : vector<16x32xf32>
    %cst_8 = arith.constant dense<0.000000e+00> : vector<16xf32>
    %23 = vector.multi_reduction <add>, %22, %cst_8 [1] : vector<16x32xf32> to vector<16xf32>
    %24 = vector.shape_cast %23 : vector<16xf32> to vector<16x1xf32>
    %cst_9 = arith.constant dense<0.000000e+00> : vector<16x16xf32>
    %25 = tpu.matmul %21, %1, %cst_9 {dimension_numbers = #tpu.dot_dimension_numbers<[1], [1], [0], [0], [0, 0, 1, 0], [], []>} : vector<16x32xf32>, vector<16x32xf32>, vector<16x16xf32> -> vector<16x16xf32>
    %26 = vector.broadcast %24 : vector<16x1xf32> to vector<16x16xf32>
    %27 = vector.broadcast %2 : vector<1x16xf32> to vector<16x16xf32>
    %28 = arith.addf %26, %27 : vector<16x16xf32>
    %cst_10 = arith.constant 2.000000e+00 : f32
    %29 = vector.broadcast %cst_10 : f32 to vector<16x16xf32>
    %30 = arith.mulf %29, %25 : vector<16x16xf32>
    %31 = arith.subf %28, %30 : vector<16x16xf32>
    %cst_11 = arith.constant 0.000000e+00 : f32
    %32 = vector.broadcast %cst_11 : f32 to vector<16x16xf32>
    %33 = arith.maximumf %31, %32 : vector<16x16xf32>
    %34 = math.sqrt %33 : vector<16x16xf32>
    %cst_12 = arith.constant 1.000000e+00 : f32
    %35 = vector.broadcast %cst_12 : f32 to vector<16x16xf32>
    %36 = arith.addf %35, %34 : vector<16x16xf32>
    %37 = tpu.reciprocal %36 : vector<16x16xf32> -> vector<16x16xf32>
    %cst_13 = arith.constant dense<0.000000e+00> : vector<16xf32>
    %38 = vector.multi_reduction <add>, %37, %cst_13 [1] : vector<16x16xf32> to vector<16xf32>
    %39 = vector.shape_cast %38 : vector<16xf32> to vector<16x1xf32>
    %cst_14 = arith.constant 9.99999996E-13 : f32
    %40 = vector.broadcast %cst_14 : f32 to vector<16x1xf32>
    %41 = arith.maximumf %39, %40 : vector<16x1xf32>
    %42 = tpu.reciprocal %41 : vector<16x1xf32> -> vector<16x1xf32>
    %43 = vector.broadcast %42 : vector<16x1xf32> to vector<16x16xf32>
    %44 = arith.mulf %37, %43 : vector<16x16xf32>
    %cst_15 = arith.constant dense<0x7F800000> : vector<16xf32>
    %45 = vector.multi_reduction <minimumf>, %34, %cst_15 [1] : vector<16x16xf32> to vector<16xf32>
    %46 = vector.shape_cast %45 : vector<16xf32> to vector<16x1xf32>
    %47 = tpu.iota {dimensions = array<i32: 1>} : vector<16x16xi32>
    %48 = vector.broadcast %46 : vector<16x1xf32> to vector<16x16xf32>
    %49 = arith.cmpf oeq, %34, %48 : vector<16x16xf32>
    %c16_i32_16 = arith.constant 16 : i32
    %50 = vector.broadcast %c16_i32_16 : i32 to vector<16x16xi32>
    %51 = arith.select %49, %47, %50 : vector<16x16xi1>, vector<16x16xi32>
    %cst_17 = arith.constant dense<2147483647> : vector<16xi32>
    %52 = vector.multi_reduction <minsi>, %51, %cst_17 [1] : vector<16x16xi32> to vector<16xi32>
    %53 = vector.shape_cast %52 : vector<16xi32> to vector<16x1xi32>
    %54 = vector.broadcast %53 : vector<16x1xi32> to vector<16x16xi32>
    %55 = arith.cmpi eq, %47, %54 : vector<16x16xi32>
    %56 = arith.extui %55 : vector<16x16xi1> to vector<16x16xi32>
    %57 = arith.sitofp %56 : vector<16x16xi32> to vector<16x16xf32>
    %cst_18 = arith.constant dense<0.000000e+00> : vector<16x32xf32>
    %58 = tpu.matmul %57, %1, %cst_18 {dimension_numbers = #tpu.dot_dimension_numbers<[1], [0], [0], [1], [0, 0, 1, 1], [], []>} : vector<16x16xf32>, vector<16x32xf32>, vector<16x32xf32> -> vector<16x32xf32>
    %59 = arith.subf %58, %0 : vector<16x32xf32>
    %cst_19 = arith.constant 1.000000e-01 : f32
    %60 = vector.broadcast %cst_19 : f32 to vector<16x32xf32>
    %61 = arith.mulf %60, %59 : vector<16x32xf32>
    %62 = arith.addf %0, %61 : vector<16x32xf32>
    %c0_20 = arith.constant 0 : index
    %c0_21 = arith.constant 0 : index
    %63 = vector.load %arg4[%c0_20, %c0_21] : memref<16x32xf32, #tpu.memory_space<vmem>>, vector<16x32xf32>
    tpu.vector_store %arg4[%c0_20, %c0_21], %62 {strides = array<i32>} : memref<16x32xf32, #tpu.memory_space<vmem>>, vector<16x32xf32>,
    %cst_22 = arith.constant 0.000000e+00 : f32
    %64 = vector.broadcast %cst_22 : f32 to vector<16x128xf32>
    %c0_23 = arith.constant 0 : index
    %c0_24 = arith.constant 0 : index
    %65 = vector.load %arg5[%c0_23, %c0_24] : memref<16x128xf32, #tpu.memory_space<vmem>>, vector<16x128xf32>
    tpu.vector_store %arg5[%c0_23, %c0_24], %64 {strides = array<i32>} : memref<16x128xf32, #tpu.memory_space<vmem>>, vector<16x128xf32>,
    %c0_25 = arith.constant 0 : index
    %c0_26 = arith.constant 0 : index
    %66 = vector.load %arg5[%c0_25, %c0_26] : memref<16x128xf32, #tpu.memory_space<vmem>>, vector<16x16xf32>
    tpu.vector_store %arg5[%c0_25, %c0_26], %44 {strides = array<i32>} : memref<16x128xf32, #tpu.memory_space<vmem>>, vector<16x16xf32>,
    %67 = arith.sitofp %53 : vector<16x1xi32> to vector<16x1xf32>
    %c0_27 = arith.constant 0 : index
    %c16 = arith.constant 16 : index
    %68 = vector.load %arg5[%c0_27, %c16] : memref<16x128xf32, #tpu.memory_space<vmem>>, vector<16x1xf32>
    tpu.vector_store %arg5[%c0_27, %c16], %67 {strides = array<i32>} : memref<16x128xf32, #tpu.memory_space<vmem>>, vector<16x1xf32>,
    return
  }
  func.func @transform_0(%arg0: i32) -> (i32, i32) {
    %c0_i32 = arith.constant 0 : i32
    %c0_i32_0 = arith.constant 0 : i32
    return %arg0, %c0_i32 : i32, i32
  }
  func.func @transform_1(%arg0: i32) -> (i32, i32) {
    %c0_i32 = arith.constant 0 : i32
    %c0_i32_0 = arith.constant 0 : i32
    %c0_i32_1 = arith.constant 0 : i32
    return %c0_i32, %c0_i32_0 : i32, i32
  }
  func.func @transform_2(%arg0: i32) -> (i32, i32) {
    %c0_i32 = arith.constant 0 : i32
    %c0_i32_0 = arith.constant 0 : i32
    %c0_i32_1 = arith.constant 0 : i32
    return %c0_i32, %c0_i32_0 : i32, i32
  }
  func.func @transform_3(%arg0: i32) -> (i32, i32) {
    %c0_i32 = arith.constant 0 : i32
    %c0_i32_0 = arith.constant 0 : i32
    return %arg0, %c0_i32 : i32, i32
  }
  func.func @transform_4(%arg0: i32) -> (i32, i32) {
    %c0_i32 = arith.constant 0 : i32
    %c0_i32_0 = arith.constant 0 : i32
    return %arg0, %c0_i32 : i32, i32
  }
}

</mosaic_0001>

<llo_original>
// kernel: tpu_custom_call.1
$region0: #{tpu_custom_call.1}
  #allocation0 [shape = 'u32[]', space=smem, size = 0x4, offset = 0x4, fixed_abs, tag = 'smem constant byte address 0x4 - core index']
  #allocation1 [shape = 'u32[144,128]{1,0:T(1,128)}', space=vmem, size = 0x12000, scoped, tag = 'internal scratch']
  %s0 = inlined_call_operand.hbm [shape: f32[16,32], index: 0, kind: input, shape index: {}]
  %s1 = inlined_call_operand.hbm [shape: f32[16,32], index: 1, kind: input, shape index: {}]
  %s2 = inlined_call_operand.vmem [shape: f32[1,16], index: 2, kind: input, shape index: {}]
  %s3 = inlined_call_operand.hbm [shape: f32[16,32], index: 3, kind: output, shape index: {0}]
  %s4 = inlined_call_operand.hbm [shape: f32[16,128], index: 4, kind: output, shape index: {1}]
  %5 = xla_tuple %s3, %s4
  %s6 = sld [smem:[#allocation0]]
  $region38: #{tpu_custom_call.1} parent=0
    _
  %s8 = ssub.s32 1, %s6
  %s9 = scalar_select 0, %s8, %s6
  $region1: #{tpu_custom_call.1} parent=0
    #allocation2 [shape = 'u8[8192]{0}', space=vmem, size = 0x2000, scoped, tag = 'input window, operand 0, single buffered']
    #allocation3 [shape = 's32[1]{0}', space=sflag, size = 0x4, scoped, tag = 'scoped memory for tpu_custom_call.1']
    #allocation4 [shape = 's32[1]{0}', space=sflag, size = 0x4, scoped, tag = 'scoped memory for tpu_custom_call.1']
    #allocation5 [shape = 'u8[8192]{0}', space=vmem, size = 0x2000, scoped, tag = 'input window, operand 1, single buffered']
    #allocation6 [shape = 's32[1]{0}', space=sflag, size = 0x4, scoped, tag = 'scoped memory for tpu_custom_call.1']
    #allocation7 [shape = 'u8[8192]{0}', space=vmem, size = 0x2000, scoped, tag = 'output window, operand 0, single buffered']
    #allocation8 [shape = 'u8[8192]{0}', space=vmem, size = 0x2000, scoped, tag = 'output window, operand 1, single buffered']
    #allocation9 [shape = 's32[1]{0}', space=sflag, size = 0x4, scoped, tag = 'scoped memory for tpu_custom_call.1']
    %10 = vsyncpa [#allocation3], 0
    %11 = vsyncpa [#allocation6], 0
    %12 = vsyncpa [#allocation4], 0
    %13 = vsyncpa [#allocation9], 0
    // Predicated region
    $region2: #{tpu_custom_call.1} parent=1 // pred_check
      _
    $region3: #{tpu_custom_call.1} parent=1 // pred_check_branch
      %15 = sbr.rel (0) target = $region5
    $region4: #{tpu_custom_call.1} parent=1 // pred_region
      %s17 = ssub.s32 256, 256
      %18 = vsyncadd [#allocation3], %s17
      %s19 = sshll.u32 [#allocation2], 4
      %s20 = int_to_ptr.vmem [resolvable:$true] %s19
      %25 = dma.hbm_to_vmem [thread:$0]  %s0, 256, %s20, [#allocation3], 128, 128, 8
    $region5: #{tpu_custom_call.1} parent=1 // pred_fallthru
      _
    // Predicated region
    $region6: #{tpu_custom_call.1} parent=1 // pred_check
      _
    $region7: #{tpu_custom_call.1} parent=1 // pred_check_branch
      %27 = sbr.rel (0) target = $region9
    $region8: #{tpu_custom_call.1} parent=1 // pred_region
      %s29 = ssub.s32 256, 256
      %30 = vsyncadd [#allocation6], %s29
      %s31 = sshll.u32 [#allocation5], 4
      %s32 = int_to_ptr.vmem [resolvable:$true] %s31
      %37 = dma.hbm_to_vmem [thread:$0]  %s1, 256, %s32, [#allocation6], 128, 128, 8
    $region9: #{tpu_custom_call.1} parent=1 // pred_fallthru
      _
    // Predicated region
    $region10: #{tpu_custom_call.1} parent=1 // pred_check
      _
    $region11: #{tpu_custom_call.1} parent=1 // pred_check_branch
      %39 = sbr.rel (0) target = $region13
    $region12: #{tpu_custom_call.1} parent=1 // pred_region
      _
    $region13: #{tpu_custom_call.1} parent=1 // pred_fallthru
      _
    // Predicated region
    $region14: #{tpu_custom_call.1} parent=1 // pred_check
      _
    $region15: #{tpu_custom_call.1} parent=1 // pred_check_branch
      %41 = sbr.rel (0) target = $region17
    $region16: #{tpu_custom_call.1} parent=1 // pred_region
      %42 = dma.done [#allocation3], 256
    $region17: #{tpu_custom_call.1} parent=1 // pred_fallthru
      _
    // Predicated region
    $region18: #{tpu_custom_call.1} parent=1 // pred_check
      _
    $region19: #{tpu_custom_call.1} parent=1 // pred_check_branch
      %44 = sbr.rel (0) target = $region21
    $region20: #{tpu_custom_call.1} parent=1 // pred_region
      %45 = dma.done [#allocation6], 256
    $region21: #{tpu_custom_call.1} parent=1 // pred_fallthru
      _
    %v46 = vld [vmem:[#allocation2] sm:$0xff]
    %v47 = vld [vmem:[#allocation2 + $0x8] sm:$0xff]
    %v48 = vld [vmem:[#allocation5] sm:$0xff]
    %v49 = vld [vmem:[#allocation5 + $0x8] sm:$0xff]
    %v50 = vld [vmem:[%s2] sm:$0x1]
    %v51 = vlaneseq
    %v52 = vshrl.u32 %v51, 7
    %v53 = vadd.s32 %v52, 8
    %v54 = vcvt.s32.f32 %v52
    %v55 = vcvt.s32.f32 %v53
    %s56 = smul.u32 0, 16
    %s57 = scvt.s32.f32 %s56
    %v58 = vstv %s57
    %v59 = vadd.f32 %v54, %v58
    %v60 = vadd.f32 %v55, %v58
    %v61 = vrcp.pop 8.0
    %v62 = vmul.f32 %v59, %v61
    %v63 = vmul.f32 %v60, %v61
    %v64 = vfloor.f32 %v62
    %v65 = vfloor.f32 %v63
    %v66 = vmul.f32 %v64, 8.0
    %v67 = vmul.f32 %v65, 8.0
    %v68 = vsub.f32 %v59, %v66
    %v69 = vsub.f32 %v60, %v67
    %v70 = vsub.f32 7.0, %v68
    %v71 = vsub.f32 7.0, %v69
    %v72 = vmul.f32 %v70, -0.105360515
    %v73 = vmul.f32 %v71, -0.105360515
    %v74 = vmul.f32 %v72, 1.442695
    %v75 = vpow.pop %v74
    %v76 = vmul.f32 %v73, 1.442695
    %v77 = vpow.pop %v76
    %v78 = vmul.f32 %v46, %v75
    %v79 = vmul.f32 %v47, %v77
    %v80 = vmul.f32 %v78, %v78
    %v81 = vmul.f32 %v79, %v79
    %vm82 = vcmask 261120
    %v83 = vsel %vm82, %v80, 0.0
    %84 = vadd.xlane.f32.xlu0 %v83
    %v85 = vpop.xlane.xlu0 %84
    %v86 = vsel %vm82, %v81, 0.0
    %87 = vadd.xlane.f32.xlu0 %v86
    %v88 = vpop.xlane.xlu0 %87
    %v90 = vsel %vm82, %v78, 0
    %v93 = vsel %vm82, %v79, 0
    %v96 = vsel %vm82, %v48, 0
    %v99 = vsel %vm82, %v49, 0
    %101 = vmatprep.subr.mxu0 0.0
    %102 = vmatpush1.xpose.msra.mxu0 0.0
    %103 = vmatprep.subr.mxu0 0.0
    %104 = vmatpush1.xpose.msra.mxu0 0.0
    %105 = vmatprep.subr.mxu0 0.0
    %106 = vmatpush1.xpose.msra.mxu0 0.0
    %107 = vmatprep.subr.mxu0 0.0
    %108 = vmatpush1.xpose.msra.mxu0 0.0
    %109 = vmatprep.subr.mxu0 0.0
    %110 = vmatpush1.xpose.msra.mxu0 0.0
    %111 = vmatprep.subr.mxu0 0.0
    %112 = vmatpush1.xpose.msra.mxu0 0.0
    %113 = vmatprep.subr.mxu0 0.0
    %114 = vmatpush1.xpose.msra.mxu0 0.0
    %115 = vmatprep.subr.mxu0 0.0
    %116 = vmatpush1.xpose.msra.mxu0 0.0
    %117 = vmatprep.subr.mxu0 0.0
    %118 = vmatpush1.xpose.msra.mxu0 0.0
    %119 = vmatprep.subr.mxu0 0.0
    %120 = vmatpush1.xpose.msra.mxu0 0.0
    %121 = vmatprep.subr.mxu0 0.0
    %122 = vmatpush1.xpose.msra.mxu0 0.0
    %123 = vmatprep.subr.mxu0 0.0
    %124 = vmatpush1.xpose.msra.mxu0 0.0
    %125 = vmatprep.subr.mxu0 0.0
    %126 = vmatpush1.xpose.msra.mxu0 0.0
    %127 = vmatprep.subr.mxu0 0.0
    %128 = vmatpush1.xpose.msra.mxu0 0.0
    %129 = vmatprep.subr.mxu0 0.0
    %130 = vmatpush1.xpose.msra.mxu0 %v99
    %131 = vmatprep.subr.mxu0 0.0
    %132 = vmatpush1.xpose.msra.mxu0 %v96
    %133 = vmatprep.subr.mxu0 0.0
    %134 = vmatpush2.xpose.msra.mxu0 0.0
    %135 = vmatprep.subr.mxu0 0.0
    %136 = vmatpush2.xpose.msra.mxu0 0.0
    %137 = vmatprep.subr.mxu0 0.0
    %138 = vmatpush2.xpose.msra.mxu0 0.0
    %139 = vmatprep.subr.mxu0 0.0
    %140 = vmatpush2.xpose.msra.mxu0 0.0
    %141 = vmatprep.subr.mxu0 0.0
    %142 = vmatpush2.xpose.msra.mxu0 0.0
    %143 = vmatprep.subr.mxu0 0.0
    %144 = vmatpush2.xpose.msra.mxu0 0.0
    %145 = vmatprep.subr.mxu0 0.0
    %146 = vmatpush2.xpose.msra.mxu0 0.0
    %147 = vmatprep.subr.mxu0 0.0
    %148 = vmatpush2.xpose.msra.mxu0 0.0
    %149 = vmatprep.subr.mxu0 0.0
    %150 = vmatpush2.xpose.msra.mxu0 0.0
    %151 = vmatprep.subr.mxu0 0.0
    %152 = vmatpush2.xpose.msra.mxu0 0.0
    %153 = vmatprep.subr.mxu0 0.0
    %154 = vmatpush2.xpose.msra.mxu0 0.0
    %155 = vmatprep.subr.mxu0 0.0
    %156 = vmatpush2.xpose.msra.mxu0 0.0
    %157 = vmatprep.subr.mxu0 0.0
    %158 = vmatpush2.xpose.msra.mxu0 0.0
    %159 = vmatprep.subr.mxu0 0.0
    %160 = vmatpush2.xpose.msra.mxu0 0.0
    %161 = vmatprep.subr.mxu0 0.0
    %162 = vmatpush2.xpose.msra.mxu0 0.0
    %163 = vmatprep.subr.mxu0 0.0
    %164 = vmatpush2.xpose.msra.mxu0 0.0
    %165 = vmatprep.mubr.f32.mxu0 0.0
    %166 = vmatmul.mubr.f32.gmra.mxu0 %v90
    %v167 = vpop.f32.mrf.mxu0
    %v168 = vadd.f32 0.0, %v167
    %v169 = vpop.f32.mrf.mxu0
    %170 = vmatprep.mubr.f32.mxu0 0.0
    %171 = vmatmul.mubr.f32.gmra.mxu0 %v93
    %v172 = vpop.f32.mrf.mxu0
    %v173 = vadd.f32 0.0, %v172
    %v174 = vpop.f32.mrf.mxu0
    %175 = vdwg.mxu0
    %v177 = vlaneseq
    %v178 = vshrl.u32 %v177, 7
    %v179 = vsub.s32 0, %v178
    %v180 = vrot.slane %v50, %v179
    %v182 = vadd.f32 %v85, %v180
    %v183 = vadd.f32 %v88, %v180
    %v184 = vmul.f32 %v168, 2.0
    %v185 = vmul.f32 %v173, 2.0
    %v186 = vsub.f32 %v182, %v184
    %v187 = vsub.f32 %v183, %v185
    %v188 = vmax.f32 %v186, 0.0
    %v189 = vmax.f32 %v187, 0.0
    %v190 = vrsqrt.pop %v188
    %v191 = vmul.f32 %v188, %v190
    %vm192 = vcmp.eq.f32.partialorder %v188, inf
    %v193 = vsel %vm192, %v188, %v191
    %vm194 = vcmp.eq.f32.partialorder %v188, 0.0
    %v195 = vand.u32 %v188, 2147483648
    %v196 = vsel %vm194, %v195, %v193
    %v197 = vrsqrt.pop %v189
    %v198 = vmul.f32 %v189, %v197
    %vm199 = vcmp.eq.f32.partialorder %v189, inf
    %v200 = vsel %vm199, %v189, %v198
    %vm201 = vcmp.eq.f32.partialorder %v189, 0.0
    %v202 = vand.u32 %v189, 2147483648
    %v203 = vsel %vm201, %v202, %v200
    %v204 = vadd.f32 %v196, 1.0
    %v205 = vadd.f32 %v203, 1.0
    %v206 = vrcp.pop %v204
    %v207 = vrcp.pop %v205
    %vm208 = vcmask 130048
    %v209 = vsel %vm208, %v206, 0.0
    %210 = vadd.xlane.f32.xlu0 %v209
    %v211 = vpop.xlane.xlu0 %210
    %v212 = vsel %vm208, %v207, 0.0
    %213 = vadd.xlane.f32.xlu0 %v212
    %v214 = vpop.xlane.xlu0 %213
    %v215 = vmax.f32 %v211, 1e-12
    %v216 = vmax.f32 %v214, 1e-12
    %v217 = vrcp.pop %v215
    %v218 = vrcp.pop %v216
    %v219 = vmul.f32 %v206, %v217
    %v220 = vmul.f32 %v207, %v218
    %v221 = vsel %vm208, %v196, inf
    %222 = vmin.xlane.f32.xlu0 %v221
    %v223 = vpop.xlane.xlu0 %222
    %v224 = vsel %vm208, %v203, inf
    %225 = vmin.xlane.f32.xlu0 %v224
    %v226 = vpop.xlane.xlu0 %225
    %v227 = vlaneseq
    %v228 = vand.u32 %v227, 127
    %vm229 = vcmp.eq.f32.partialorder %v196, %v223
    %vm230 = vcmp.eq.f32.partialorder %v203, %v226
    %v231 = vsel %vm229, %v228, 16
    %v232 = vsel %vm230, %v228, 16
    %v233 = vsel %vm208, %v231, 2147483647
    %v234 = vand.u32 %v233, 65535
    %v235 = vshra.s32 %v233, 16
    %v236 = vcvt.s32.f32 %v234
    %v237 = vcvt.s32.f32 %v235
    %238 = vmin.xlane.f32.xlu0 %v237
    %v239 = vpop.xlane.xlu0 %238
    %vm240 = vcmp.eq.f32.partialorder %v237, %v239
    %v241 = vsel %vm240, %v236, inf
    %242 = vmin.xlane.f32.xlu0 %v241
    %v243 = vpop.xlane.xlu0 %242
    %v244 = vcvt.f32.s32 %v243
    %v245 = vcvt.f32.s32 %v239
    %v246 = vshll.u32 %v245, 16
    %v247 = vadd.s32 %v246, %v244
    %v248 = vsel %vm208, %v232, 2147483647
    %v249 = vand.u32 %v248, 65535
    %v250 = vshra.s32 %v248, 16
    %v251 = vcvt.s32.f32 %v249
    %v252 = vcvt.s32.f32 %v250
    %253 = vmin.xlane.f32.xlu0 %v252
    %v254 = vpop.xlane.xlu0 %253
    %vm255 = vcmp.eq.f32.partialorder %v252, %v254
    %v256 = vsel %vm255, %v251, inf
    %257 = vmin.xlane.f32.xlu0 %v256
    %v258 = vpop.xlane.xlu0 %257
    %v259 = vcvt.f32.s32 %v258
    %v260 = vcvt.f32.s32 %v254
    %v261 = vshll.u32 %v260, 16
    %v262 = vadd.s32 %v261, %v259
    %vm263 = vcmp.eq.s32.totalorder %v228, %v247
    %vm264 = vcmp.eq.s32.totalorder %v228, %v262
    %v265 = vsel %vm263, 1, 0
    %v266 = vsel %vm264, 1, 0
    %v267 = vcvt.s32.f32 %v265
    %v268 = vcvt.s32.f32 %v266
    %v270 = vsel %vm208, %v267, 0
    %v273 = vsel %vm208, %v268, 0
    %275 = vmatprep.subr.mxu0 0.0
    %276 = vmatpush1.msra.mxu0 0.0
    %277 = vmatprep.subr.mxu0 0.0
    %278 = vmatpush1.msra.mxu0 0.0
    %279 = vmatprep.subr.mxu0 0.0
    %280 = vmatpush1.msra.mxu0 0.0
    %281 = vmatprep.subr.mxu0 0.0
    %282 = vmatpush1.msra.mxu0 0.0
    %283 = vmatprep.subr.mxu0 0.0
    %284 = vmatpush1.msra.mxu0 0.0
    %285 = vmatprep.subr.mxu0 0.0
    %286 = vmatpush1.msra.mxu0 0.0
    %287 = vmatprep.subr.mxu0 0.0
    %288 = vmatpush1.msra.mxu0 0.0
    %289 = vmatprep.subr.mxu0 0.0
    %290 = vmatpush1.msra.mxu0 0.0
    %291 = vmatprep.subr.mxu0 0.0
    %292 = vmatpush1.msra.mxu0 0.0
    %293 = vmatprep.subr.mxu0 0.0
    %294 = vmatpush1.msra.mxu0 0.0
    %295 = vmatprep.subr.mxu0 0.0
    %296 = vmatpush1.msra.mxu0 0.0
    %297 = vmatprep.subr.mxu0 0.0
    %298 = vmatpush1.msra.mxu0 0.0
    %299 = vmatprep.subr.mxu0 0.0
    %300 = vmatpush1.msra.mxu0 0.0
    %301 = vmatprep.subr.mxu0 0.0
    %302 = vmatpush1.msra.mxu0 0.0
    %303 = vmatprep.subr.mxu0 0.0
    %304 = vmatpush1.msra.mxu0 %v49
    %305 = vmatprep.subr.mxu0 0.0
    %306 = vmatpush1.msra.mxu0 %v48
    %307 = vmatprep.subr.mxu0 0.0
    %308 = vmatpush2.msra.mxu0 0.0
    %309 = vmatprep.subr.mxu0 0.0
    %310 = vmatpush2.msra.mxu0 0.0
    %311 = vmatprep.subr.mxu0 0.0
    %312 = vmatpush2.msra.mxu0 0.0
    %313 = vmatprep.subr.mxu0 0.0
    %314 = vmatpush2.msra.mxu0 0.0
    %315 = vmatprep.subr.mxu0 0.0
    %316 = vmatpush2.msra.mxu0 0.0
    %317 = vmatprep.subr.mxu0 0.0
    %318 = vmatpush2.msra.mxu0 0.0
    %319 = vmatprep.subr.mxu0 0.0
    %320 = vmatpush2.msra.mxu0 0.0
    %321 = vmatprep.subr.mxu0 0.0
    %322 = vmatpush2.msra.mxu0 0.0
    %323 = vmatprep.subr.mxu0 0.0
    %324 = vmatpush2.msra.mxu0 0.0
    %325 = vmatprep.subr.mxu0 0.0
    %326 = vmatpush2.msra.mxu0 0.0
    %327 = vmatprep.subr.mxu0 0.0
    %328 = vmatpush2.msra.mxu0 0.0
    %329 = vmatprep.subr.mxu0 0.0
    %330 = vmatpush2.msra.mxu0 0.0
    %331 = vmatprep.subr.mxu0 0.0
    %332 = vmatpush2.msra.mxu0 0.0
    %333 = vmatprep.subr.mxu0 0.0
    %334 = vmatpush2.msra.mxu0 0.0
    %335 = vmatprep.subr.mxu0 0.0
    %336 = vmatpush2.msra.mxu0 0.0
    %337 = vmatprep.subr.mxu0 0.0
    %338 = vmatpush2.msra.mxu0 0.0
    %339 = vmatprep.mubr.f32.mxu0 0.0
    %340 = vmatmul.mubr.f32.gmra.mxu0 %v270
    %v341 = vpop.f32.mrf.mxu0
    %v342 = vadd.f32 0.0, %v341
    %v343 = vpop.f32.mrf.mxu0
    %344 = vmatprep.mubr.f32.mxu0 0.0
    %345 = vmatmul.mubr.f32.gmra.mxu0 %v273
    %v346 = vpop.f32.mrf.mxu0
    %v347 = vadd.f32 0.0, %v346
    %v348 = vpop.f32.mrf.mxu0
    %349 = vdwg.mxu0
    %v350 = vsub.f32 %v342, %v46
    %v351 = vsub.f32 %v347, %v47
    %v352 = vmul.f32 %v350, 0.1
    %v353 = vmul.f32 %v351, 0.1
    %v354 = vadd.f32 %v46, %v352
    %v355 = vadd.f32 %v47, %v353
    %356 = vst.msk [vmem:[#allocation7] sm:$0xff] %vm82, %v354
    %357 = vst.msk [vmem:[#allocation7 + $0x8] sm:$0xff] %vm82, %v355
    %358 = vst [vmem:[#allocation8] sm:$0xff] 0.0
    %359 = vst [vmem:[#allocation8 + $0x8] sm:$0xff] 0.0
    %360 = vst.msk [vmem:[#allocation8] sm:$0xff] %vm208, %v219
    %361 = vst.msk [vmem:[#allocation8 + $0x8] sm:$0xff] %vm208, %v220
    %v362 = vcvt.s32.f32 %v247
    %v363 = vcvt.s32.f32 %v262
    %vm364 = vcmask 138368
    %365 = vst.msk [vmem:[#allocation8] sm:$0xff] %vm364, %v362
    %366 = vst.msk [vmem:[#allocation8 + $0x8] sm:$0xff] %vm364, %v363
    // Predicated region
    $region22: #{tpu_custom_call.1} parent=1 // pred_check
      _
    $region23: #{tpu_custom_call.1} parent=1 // pred_check_branch
      %368 = sbr.rel (0) target = $region25
    $region24: #{tpu_custom_call.1} parent=1 // pred_region
      %s370 = ssub.s32 256, 256
      %371 = vsyncadd [#allocation4], %s370
      %s372 = sshll.u32 [#allocation7], 4
      %s373 = int_to_ptr.vmem [resolvable:$true] %s372
      %378 = dma.vmem_to_hbm [thread:$0]  %s373, 256, %s3, [#allocation4], 128, 128, 8
    $region25: #{tpu_custom_call.1} parent=1 // pred_fallthru
      _
    // Predicated region
    $region26: #{tpu_custom_call.1} parent=1 // pred_check
      _
    $region27: #{tpu_custom_call.1} parent=1 // pred_check_branch
      %380 = sbr.rel (0) target = $region29
    $region28: #{tpu_custom_call.1} parent=1 // pred_region
      %s382 = ssub.s32 256, 256
      %383 = vsyncadd [#allocation9], %s382
      %s384 = sshll.u32 [#allocation8], 4
      %s385 = int_to_ptr.vmem [resolvable:$true] %s384
      %390 = dma.vmem_to_hbm [thread:$0]  %s385, 256, %s4, [#allocation9], 128, 128, 8
    $region29: #{tpu_custom_call.1} parent=1 // pred_fallthru
      _
    // Predicated region
    $region30: #{tpu_custom_call.1} parent=1 // pred_check
      _
    $region31: #{tpu_custom_call.1} parent=1 // pred_check_branch
      %392 = sbr.rel (0) target = $region33
    $region32: #{tpu_custom_call.1} parent=1 // pred_region
      %393 = dma.done [#allocation4], 256
    $region33: #{tpu_custom_call.1} parent=1 // pred_fallthru
      _
    // Predicated region
    $region34: #{tpu_custom_call.1} parent=1 // pred_check
      _
    $region35: #{tpu_custom_call.1} parent=1 // pred_check_branch
      %395 = sbr.rel (0) target = $region37
    $region36: #{tpu_custom_call.1} parent=1 // pred_region
      %396 = dma.done [#allocation9], 256
    $region37: #{tpu_custom_call.1} parent=1 // pred_fallthru
      _
    %397 = vsyncpa [#allocation3], 1
    %398 = vsyncpa [#allocation6], 1
    %399 = vsyncpa [#allocation4], 1
    %400 = vsyncpa [#allocation9], 1

</llo_original>
